<compile_context>
chip_gen: v7x
topology: tpu7x:2x2x1
jax: 0.10.0
libtpu: 0.0.40
codegen_flags: <defaults>
</compile_context>

<pallas_src>
import functools

import jax
import jax.numpy as jnp
from jax import lax
from jax.experimental import pallas as pl
from jax.experimental.pallas import tpu as pltpu


def _round_up(x, m):
    return ((x + m - 1) // m) * m


def _largest_tile(n, cap):
    # n is always a multiple of 128.
    for t in (512, 256, 128):
        if t <= cap and n % t == 0:
            return t
    return 128


def _vmem_budget_bytes():
    """Per-core physical VMEM with ~15% headroom (generation aware)."""
    try:
        phys = int(pltpu.get_tpu_info().vmem_capacity_bytes)
    except Exception:
        phys = 64 * 1024 * 1024  # conservative fallback (v7x per-TC size)
    return max(int(phys * 0.85), 32 * 1024 * 1024)


def _fp_kernel(*refs, tm, tk, use_mask, adj_resident):
    if use_mask:
        (adj_ref, x_seed_ref, x_rest_ref, mask_ref,
         out_ref, state_ref, acc_ref) = refs
    else:
        adj_ref, x_seed_ref, out_ref, state_ref, acc_ref = refs
        x_rest_ref = mask_ref = None

    # grid = (feature_tile, iteration, row_tile, k_tile)
    it = pl.program_id(1)
    i = pl.program_id(2)
    k = pl.program_id(3)
    n_it = pl.num_programs(1)
    n_k = pl.num_programs(3)

    row_i = pl.multiple_of(i * tm, tm)
    row_k = pl.multiple_of(k * tk, tk)

    src = lax.rem(it, 2)      # state half holding the previous iterate
    dst = 1 - src             # state half receiving this iterate

    # Seed state half 0 with bf16(x) once per feature tile.  x_seed's
    # index_map delivers the k-th row block exactly when (it == 0, i == 0),
    # so this is a single streaming pass over x.
    @pl.when((it == 0) & (i == 0))
    def _():
        state_ref[0, pl.ds(row_k, tk), :] = x_seed_ref[...]

    if adj_resident:
        # Whole adjacency is VMEM-resident; slice the (tm, tk) tile in-kernel.
        lhs = adj_ref[pl.ds(row_i, tm), pl.ds(row_k, tk)]
    else:
        lhs = adj_ref[...]
    rhs = state_ref[src, pl.ds(row_k, tk), :]
    prod = jnp.dot(lhs, rhs, preferred_element_type=jnp.float32)

    # Direct write at k == 0 (saves a zero-init store + reload), accumulate after.
    @pl.when(k == 0)
    def _():
        acc_ref[...] = prod

    @pl.when(k > 0)
    def _():
        acc_ref[...] += prod

    # Finalize this row tile on the last K step: masked restore from the f32
    # originals, stash into the dst half of the state for the next iteration,
    # emit the output on the final iteration only.
    @pl.when(k == n_k - 1)
    def _():
        res = acc_ref[...]
        if use_mask:
            keep = mask_ref[...] != 0
            res = jnp.where(keep, x_rest_ref[...], res)
        state_ref[dst, pl.ds(row_i, tm), :] = res.astype(jnp.bfloat16)

        @pl.when(it == n_it - 1)
        def _():
            out_ref[...] = res


def feature_propagation_t(x, edge_index, edge_weight, b_mask, *,
                          num_iterations, mask=True, alpha=0.0,
                          force_streamed_adj=False):
    """JAX/Pallas equivalent of FeaturePropagationT.forward.

    x:           [N, F] float
    edge_index:  [2, E] int   (row, col)
    edge_weight: [E]    float
    b_mask:      [K, 2] int   pairs (i, j) pinned to the original x each step
    """
    del alpha  # unused in the reference forward pass
    num_iterations = int(num_iterations)
    use_mask = bool(mask)
    n_nodes, feat = x.shape
    x = x.astype(jnp.float32)
    if num_iterations <= 0:
        return x

    # Lane / MXU friendly padded sizes.
    n_pad = _round_up(max(n_nodes, 1), 128)
    f_pad = _round_up(max(feat, 1), 128)

    budget = _vmem_budget_bytes()
    tm = tk = _largest_tile(n_pad, 512)   # big tiles amortize per-step overhead

    def working_set(tf, resident):
        # Conservative: Pallas allocates 2 buffers per BlockSpec by default,
        # even for constant block indices (which are DMA'd only once).
        ws = (2 * n_pad * n_pad * 2) if resident else (2 * tm * tk * 2)
        ws += 2 * tk * tf * 2                  # bf16 x seed blocks
        ws += 2 * tm * tf * 4                  # f32 output blocks
        if use_mask:
            ws += 2 * tm * tf * (4 + 1)        # f32 restore + int8 mask row tiles
        ws += 2 * n_pad * tf * 2               # resident bf16 ping-pong state
        ws += tm * tf * 4                      # f32 accumulator
        return ws

    # Resident adjacency when it (incl. the default 2-buffer allocation) fits
    # comfortably; this removes the num_iterations * n_f re-streaming of adj
    # that made v1 HBM-bound.
    tf_res = 256 if f_pad % 256 == 0 else 128
    adj_resident = ((not force_streamed_adj)
                    and 2 * n_pad * n_pad * 2 <= budget // 2
                    and working_set(tf_res, True) <= int(budget * 0.9))
    if adj_resident:
        tf = tf_res
    else:
        # Streamed adjacency: widen tf toward the roofline knee (VMEM permitting).
        tf = _largest_tile(f_pad, 512)
        while tf > 128 and working_set(tf, False) > int(budget * 0.9):
            tf //= 2

    ws = working_set(tf, adj_resident)
    vmem_limit = int(min(budget, max(ws + ws // 4 + (2 << 20), 16 << 20)))

    # Dense padded adjacency (duplicate edges sum, like sparse -> to_dense),
    # cast to bf16 for the MXU (f32 accumulation inside the kernel).
    # NOTE: for a static graph this densify/cast should be hoisted & cached by
    # the caller -- it is pure wrapper-side cost.
    adj = jnp.zeros((n_pad, n_pad), jnp.float32)
    adj = adj.at[edge_index[0], edge_index[1]].add(edge_weight.astype(jnp.float32))
    adj_bf16 = adj.astype(jnp.bfloat16)

    x_pad = jnp.zeros((n_pad, f_pad), jnp.float32).at[:n_nodes, :feat].set(x)
    x_seed = x_pad.astype(jnp.bfloat16)

    n_f = f_pad // tf
    n_i = n_pad // tm
    n_k = n_pad // tk
    last_it = num_iterations - 1

    if adj_resident:
        adj_spec = pl.BlockSpec((n_pad, n_pad), lambda f, it, i, k: (0, 0))
    else:
        adj_spec = pl.BlockSpec((tm, tk), lambda f, it, i, k: (i, k))

    # k-indexed seed blocks only during (it == 0, i == 0); afterwards the block
    # index is pinned to 0 so no further DMA traffic is generated for x_seed.
    x_seed_spec = pl.BlockSpec(
        (tk, tf),
        lambda f, it, i, k: (jnp.where((it == 0) & (i == 0), k, 0), f))

    in_specs = [adj_spec, x_seed_spec]
    operands = [adj_bf16, x_seed]
    if use_mask:
        mask_dense = jnp.zeros((n_pad, f_pad), jnp.int8)
        mask_dense = mask_dense.at[b_mask[:, 0], b_mask[:, 1]].set(1)
        in_specs += [pl.BlockSpec((tm, tf), lambda f, it, i, k: (i, f)),   # f32 originals
                     pl.BlockSpec((tm, tf), lambda f, it, i, k: (i, f))]   # int8 mask
        operands += [x_pad, mask_dense]

    # Output block index only advances on the final iteration, so each output
    # block is written exactly once (no redundant / indeterminate writebacks).
    out_spec = pl.BlockSpec(
        (tm, tf), lambda f, it, i, k: (jnp.where(it == last_it, i, 0), f))

    kernel = functools.partial(_fp_kernel, tm=tm, tk=tk,
                               use_mask=use_mask, adj_resident=adj_resident)

    out_pad = pl.pallas_call(
        kernel,
        out_shape=jax.ShapeDtypeStruct((n_pad, f_pad), jnp.float32),
        grid=(n_f, num_iterations, n_i, n_k),
        in_specs=in_specs,
        out_specs=out_spec,
        scratch_shapes=[
            pltpu.VMEM((2, n_pad, tf), jnp.bfloat16),   # ping-pong state
            pltpu.VMEM((tm, tf), jnp.float32),          # row-tile accumulator
        ],
        compiler_params=pltpu.CompilerParams(
            dimension_semantics=("parallel", "arbitrary", "arbitrary", "arbitrary"),
            vmem_limit_bytes=vmem_limit),
    )(*operands)

    return out_pad[:n_nodes, :feat]


def _reference(x, edge_index, edge_weight, b_mask, num_iterations, mask):
    """Plain-JAX reference with the same bf16-operand / f32-accumulate numerics."""
    n = x.shape[0]
    adj = jnp.zeros((n, n), jnp.float32)
    adj = adj.at[edge_index[0], edge_index[1]].add(edge_weight.astype(jnp.float32))
    adj_bf16 = adj.astype(jnp.bfloat16)
    orig = x.astype(jnp.float32)
    out = orig
    for _ in range(num_iterations):
        out = jnp.dot(adj_bf16, out.astype(jnp.bfloat16),
                      preferred_element_type=jnp.float32)
        if mask:
            out = out.at[b_mask[:, 0], b_mask[:, 1]].set(
                orig[b_mask[:, 0], b_mask[:, 1]])
    return out


def _make_case(key, n_nodes, feat, n_edges, n_pairs):
    ks = jax.random.split(key, 6)
    x = jax.random.normal(ks[0], (n_nodes, feat), dtype=jnp.float32)
    edge_index = jnp.stack([
        jax.random.randint(ks[1], (n_edges,), 0, n_nodes, dtype=jnp.int32),
        jax.random.randint(ks[2], (n_edges,), 0, n_nodes, dtype=jnp.int32),
    ])
    edge_weight = jax.random.uniform(ks[3], (n_edges,), dtype=jnp.float32)
    b_mask = jnp.stack([
        jax.random.randint(ks[4], (n_pairs,), 0, n_nodes, dtype=jnp.int32),
        jax.random.randint(ks[5], (n_pairs,), 0, feat, dtype=jnp.int32),
    ], axis=1)
    return x, edge_index, edge_weight, b_mask


if __name__ == "__main__":
    k1, k2, k3 = jax.random.split(jax.random.PRNGKey(0), 3)

    # Case 1: small, masked, VMEM-resident adjacency (single tile everywhere).
    x, ei, ew, bm = _make_case(k1, n_nodes=24, feat=96, n_edges=64, n_pairs=48)
    out = feature_propagation_t(x, ei, ew, bm, num_iterations=3, mask=True)
    out = jax.block_until_ready(out)
    ref = _reference(x, ei, ew, bm, 3, True)
    assert out.shape == ref.shape
    assert jnp.allclose(out, ref, atol=2e-3, rtol=2e-3), "case 1 mismatch"

    # Case 2: multi row/k tiles (n_pad=384, 3x3 tiles), masked, resident adj.
    x, ei, ew, bm = _make_case(k2, n_nodes=300, feat=160, n_edges=900, n_pairs=256)
    out = feature_propagation_t(x, ei, ew, bm, num_iterations=2, mask=True)
    out = jax.block_until_ready(out)
    ref = _reference(x, ei, ew, bm, 2, True)
    assert out.shape == ref.shape
    assert jnp.allclose(out, ref, atol=2e-3, rtol=2e-3), "case 2 mismatch"

    # Case 3: streamed-adjacency code path, mask disabled.
    x, ei, ew, bm = _make_case(k3, n_nodes=24, feat=96, n_edges=64, n_pairs=16)
    out = feature_propagation_t(x, ei, ew, bm, num_iterations=2, mask=False,
                                force_streamed_adj=True)
    out = jax.block_until_ready(out)
    ref = _reference(x, ei, ew, bm, 2, False)
    assert out.shape == ref.shape
    assert jnp.allclose(out, ref, atol=2e-3, rtol=2e-3), "case 3 mismatch"

    print("KERNEL_OK")
</pallas_src>

<mosaic_0001>
module attributes {stable_mosaic.version = 11 : i64} {
  func.func @_fp_kernel(%arg0: i32, %arg1: i32, %arg2: i32, %arg3: i32, %arg4: memref<128x128xbf16, #tpu.memory_space<vmem>>, %arg5: memref<128x128xbf16, #tpu.memory_space<vmem>>, %arg6: memref<128x128xf32, #tpu.memory_space<vmem>>, %arg7: memref<128x128xi8, #tpu.memory_space<vmem>>, %arg8: memref<128x128xf32, #tpu.memory_space<vmem>>, %arg9: memref<2x128x128xbf16, #tpu.memory_space<vmem>>, %arg10: memref<128x128xf32, #tpu.memory_space<vmem>>) attributes {dimension_semantics = [#tpu.dimension_semantics<parallel>, #tpu.dimension_semantics<arbitrary>, #tpu.dimension_semantics<arbitrary>, #tpu.dimension_semantics<arbitrary>], iteration_bounds = array<i64: 1, 3, 1, 1>, scalar_prefetch = 0 : i64, scratch_operands = 2 : i64, tpu.core_type = #tpu.core_type<tc>, window_params = [{pipeline_mode = #tpu.pipeline_mode<synchronous>, transform_indices = @transform_0, window_bounds = array<i64: 128, 128>}, {transform_indices = @transform_1, window_bounds = array<i64: 128, 128>}, {transform_indices = @transform_2, window_bounds = array<i64: 128, 128>}, {transform_indices = @transform_3, window_bounds = array<i64: 128, 128>}, {transform_indices = @transform_4, window_bounds = array<i64: 128, 128>}]} {
    %c128_i32 = arith.constant 128 : i32
    %0 = arith.muli %arg2, %c128_i32 : i32
    %1 = tpu.assume_multiple %0, 128 : i32
    %c128_i32_0 = arith.constant 128 : i32
    %2 = arith.muli %arg3, %c128_i32_0 : i32
    %3 = tpu.assume_multiple %2, 128 : i32
    %c2_i32 = arith.constant 2 : i32
    %4 = arith.remsi %arg1, %c2_i32 : i32
    %c1_i32 = arith.constant 1 : i32
    %5 = arith.subi %c1_i32, %4 : i32
    %c0_i32 = arith.constant 0 : i32
    %6 = arith.cmpi eq, %arg1, %c0_i32 : i32
    %c0_i32_1 = arith.constant 0 : i32
    %7 = arith.cmpi eq, %arg2, %c0_i32_1 : i32
    %8 = arith.andi %6, %7 : i1
    %9 = arith.extui %8 : i1 to i32
    %c0_i32_2 = arith.constant 0 : i32
    %10 = arith.cmpi ne, %9, %c0_i32_2 : i32
    scf.if %10 {
      %c0_9 = arith.constant 0 : index
      %c0_10 = arith.constant 0 : index
      %28 = vector.load %arg5[%c0_9, %c0_10] : memref<128x128xbf16, #tpu.memory_space<vmem>>, vector<128x128xbf16>
      %c0_11 = arith.constant 0 : index
      %29 = arith.index_cast %3 : i32 to index
      %c0_12 = arith.constant 0 : index
      %30 = vector.load %arg9[%c0_11, %29, %c0_12] : memref<2x128x128xbf16, #tpu.memory_space<vmem>>, vector<1x128x128xbf16>
      %31 = vector.shape_cast %30 : vector<1x128x128xbf16> to vector<128x128xbf16>
      %32 = vector.shape_cast %28 : vector<128x128xbf16> to vector<1x128x128xbf16>
      tpu.vector_store %arg9[%c0_11, %29, %c0_12], %32 {strides = array<i32>} : memref<2x128x128xbf16, #tpu.memory_space<vmem>>, vector<1x128x128xbf16>,
    } else {
    }
    %11 = arith.index_cast %1 : i32 to index
    %12 = arith.index_cast %3 : i32 to index
    %13 = vector.load %arg4[%11, %12] : memref<128x128xbf16, #tpu.memory_space<vmem>>, vector<128x128xbf16>
    %14 = arith.index_cast %4 : i32 to index
    %15 = arith.index_cast %3 : i32 to index
    %c0 = arith.constant 0 : index
    %16 = vector.load %arg9[%14, %15, %c0] : memref<2x128x128xbf16, #tpu.memory_space<vmem>>, vector<1x128x128xbf16>
    %17 = vector.shape_cast %16 : vector<1x128x128xbf16> to vector<128x128xbf16>
    %cst = arith.constant dense<0.000000e+00> : vector<128x128xf32>
    %18 = tpu.matmul %13, %17, %cst {dimension_numbers = #tpu.dot_dimension_numbers<[1], [0], [0], [1], [0, 0, 1, 1], [], []>} : vector<128x128xbf16>, vector<128x128xbf16>, vector<128x128xf32> -> vector<128x128xf32>
    %c0_i32_3 = arith.constant 0 : i32
    %19 = arith.cmpi eq, %arg3, %c0_i32_3 : i32
    %20 = arith.extui %19 : i1 to i32
    %c0_i32_4 = arith.constant 0 : i32
    %21 = arith.cmpi ne, %20, %c0_i32_4 : i32
    scf.if %21 {
      %c0_9 = arith.constant 0 : index
      %c0_10 = arith.constant 0 : index
      %28 = vector.load %arg10[%c0_9, %c0_10] : memref<128x128xf32, #tpu.memory_space<vmem>>, vector<128x128xf32>
      tpu.vector_store %arg10[%c0_9, %c0_10], %18 {strides = array<i32>} : memref<128x128xf32, #tpu.memory_space<vmem>>, vector<128x128xf32>,
    } else {
    }
    %c0_i32_5 = arith.constant 0 : i32
    %22 = arith.cmpi sgt, %arg3, %c0_i32_5 : i32
    %23 = arith.extui %22 : i1 to i32
    %c0_i32_6 = arith.constant 0 : i32
    %24 = arith.cmpi ne, %23, %c0_i32_6 : i32
    scf.if %24 {
      %c0_9 = arith.constant 0 : index
      %c0_10 = arith.constant 0 : index
      %28 = vector.load %arg10[%c0_9, %c0_10] : memref<128x128xf32, #tpu.memory_space<vmem>>, vector<128x128xf32>
      %29 = arith.addf %28, %18 : vector<128x128xf32>
      %c0_11 = arith.constant 0 : index
      %c0_12 = arith.constant 0 : index
      %30 = vector.load %arg10[%c0_11, %c0_12] : memref<128x128xf32, #tpu.memory_space<vmem>>, vector<128x128xf32>
      tpu.vector_store %arg10[%c0_11, %c0_12], %29 {strides = array<i32>} : memref<128x128xf32, #tpu.memory_space<vmem>>, vector<128x128xf32>,
    } else {
    }
    %c0_i32_7 = arith.constant 0 : i32
    %25 = arith.cmpi eq, %arg3, %c0_i32_7 : i32
    %26 = arith.extui %25 : i1 to i32
    %c0_i32_8 = arith.constant 0 : i32
    %27 = arith.cmpi ne, %26, %c0_i32_8 : i32
    scf.if %27 {
      %c0_9 = arith.constant 0 : index
      %c0_10 = arith.constant 0 : index
      %28 = vector.load %arg10[%c0_9, %c0_10] : memref<128x128xf32, #tpu.memory_space<vmem>>, vector<128x128xf32>
      %c0_11 = arith.constant 0 : index
      %c0_12 = arith.constant 0 : index
      %29 = vector.load %arg7[%c0_11, %c0_12] : memref<128x128xi8, #tpu.memory_space<vmem>>, vector<128x128xi8>
      %c0_i8 = arith.constant 0 : i8
      %30 = vector.broadcast %c0_i8 : i8 to vector<128x128xi8>
      %31 = arith.cmpi ne, %29, %30 : vector<128x128xi8>
      %c0_13 = arith.constant 0 : index
      %c0_14 = arith.constant 0 : index
      %32 = vector.load %arg6[%c0_13, %c0_14] : memref<128x128xf32, #tpu.memory_space<vmem>>, vector<128x128xf32>
      %33 = arith.select %31, %32, %28 : vector<128x128xi1>, vector<128x128xf32>
      %34 = arith.truncf %33 : vector<128x128xf32> to vector<128x128xbf16>
      %35 = arith.index_cast %5 : i32 to index
      %36 = arith.index_cast %1 : i32 to index
      %c0_15 = arith.constant 0 : index
      %37 = vector.load %arg9[%35, %36, %c0_15] : memref<2x128x128xbf16, #tpu.memory_space<vmem>>, vector<1x128x128xbf16>
      %38 = vector.shape_cast %37 : vector<1x128x128xbf16> to vector<128x128xbf16>
      %39 = vector.shape_cast %34 : vector<128x128xbf16> to vector<1x128x128xbf16>
      tpu.vector_store %arg9[%35, %36, %c0_15], %39 {strides = array<i32>} : memref<2x128x128xbf16, #tpu.memory_space<vmem>>, vector<1x128x128xbf16>,
      %c2_i32_16 = arith.constant 2 : i32
      %40 = arith.cmpi eq, %arg1, %c2_i32_16 : i32
      %41 = arith.extui %40 : i1 to i32
      %c0_i32_17 = arith.constant 0 : i32
      %42 = arith.cmpi ne, %41, %c0_i32_17 : i32
      scf.if %42 {
        %c0_18 = arith.constant 0 : index
        %c0_19 = arith.constant 0 : index
        %43 = vector.load %arg8[%c0_18, %c0_19] : memref<128x128xf32, #tpu.memory_space<vmem>>, vector<128x128xf32>
        tpu.vector_store %arg8[%c0_18, %c0_19], %33 {strides = array<i32>} : memref<128x128xf32, #tpu.memory_space<vmem>>, vector<128x128xf32>,
      } else {
      }
    } else {
    }
    return
  }
  func.func @transform_0(%arg0: i32, %arg1: i32, %arg2: i32, %arg3: i32) -> (i32, i32) {
    %c0_i32 = arith.constant 0 : i32
    %c0_i32_0 = arith.constant 0 : i32
    %c0_i32_1 = arith.constant 0 : i32
    return %c0_i32, %c0_i32_0 : i32, i32
  }
  func.func @transform_1(%arg0: i32, %arg1: i32, %arg2: i32, %arg3: i32) -> (i32, i32) {
    %c0_i32 = arith.constant 0 : i32
    %0 = arith.cmpi eq, %arg1, %c0_i32 : i32
    %c0_i32_0 = arith.constant 0 : i32
    %1 = arith.cmpi eq, %arg2, %c0_i32_0 : i32
    %2 = arith.andi %0, %1 : i1
    %c0_i32_1 = arith.constant 0 : i32
    %3 = arith.select %2, %arg3, %c0_i32_1 : i32
    %c0_i32_2 = arith.constant 0 : i32
    return %3, %arg0 : i32, i32
  }
  func.func @transform_2(%arg0: i32, %arg1: i32, %arg2: i32, %arg3: i32) -> (i32, i32) {
    %c0_i32 = arith.constant 0 : i32
    return %arg2, %arg0 : i32, i32
  }
  func.func @transform_3(%arg0: i32, %arg1: i32, %arg2: i32, %arg3: i32) -> (i32, i32) {
    %c0_i32 = arith.constant 0 : i32
    return %arg2, %arg0 : i32, i32
  }
  func.func @transform_4(%arg0: i32, %arg1: i32, %arg2: i32, %arg3: i32) -> (i32, i32) {
    %c2_i32 = arith.constant 2 : i32
    %0 = arith.cmpi eq, %arg1, %c2_i32 : i32
    %c0_i32 = arith.constant 0 : i32
    %1 = arith.select %0, %arg2, %c0_i32 : i32
    %c0_i32_0 = arith.constant 0 : i32
    return %1, %arg0 : i32, i32
  }
}

</mosaic_0001>

<llo_original>
// kernel: tpu_custom_call.1
$region0: #{tpu_custom_call.1}
  #allocation0 [shape = 'u32[]', space=smem, size = 0x4, offset = 0x4, fixed_abs, tag = 'smem constant byte address 0x4 - core index']
  #allocation1 [shape = 'u32[144,128]{1,0:T(1,128)}', space=vmem, size = 0x12000, scoped, tag = 'internal scratch']
  #allocation2 [shape = 'bf16[2,128,128]{2,1,0:T(16,128)(2,1)}', space=vmem, size = 0x10000, scoped, tag = 'scratch operand']
  #allocation3 [shape = 'f32[128,128]{1,0:T(8,128)}', space=vmem, size = 0x10000, scoped, tag = 'scratch operand']
  %s0 = inlined_call_operand.hbm [shape: bf16[128,128], index: 0, kind: input, shape index: {}]
  %s1 = inlined_call_operand.hbm [shape: bf16[128,128], index: 1, kind: input, shape index: {}]
  %s2 = inlined_call_operand.hbm [shape: f32[128,128], index: 2, kind: input, shape index: {}]
  %s3 = inlined_call_operand.hbm [shape: s8[128,128], index: 3, kind: input, shape index: {}]
  %s4 = inlined_call_operand.hbm [shape: f32[128,128], index: 4, kind: output, shape index: {}]
  %s5 = sld [smem:[#allocation0]]
  $region85: #{tpu_custom_call.1} parent=0
    _
  %s7 = ssub.s32 1, %s5
  %s8 = scalar_select 0, %s7, %s5
  $region1: #{tpu_custom_call.1} parent=0
    #allocation4 [shape = 'u8[32768]{0}', space=vmem, size = 0x8000, scoped, tag = 'input window, operand 0, single buffered']
    #allocation5 [shape = 's32[2]{0}', space=sflag, size = 0x8, scoped, tag = 'scoped memory for tpu_custom_call.1']
    #allocation6 [shape = 's32[2]{0}', space=sflag, size = 0x8, scoped, tag = 'scoped memory for tpu_custom_call.1']
    #allocation7 [shape = 'u8[65536]{0}', space=vmem, size = 0x10000, scoped, tag = 'input window, operand 1']
    #allocation8 [shape = 's32[2]{0}', space=sflag, size = 0x8, scoped, tag = 'scoped memory for tpu_custom_call.1']
    #allocation9 [shape = 'u8[65536]{0}', space=vmem, size = 0x10000, scoped, tag = 'input window, operand 2, single buffered']
    #allocation10 [shape = 'u8[16384]{0}', space=vmem, size = 0x4000, scoped, tag = 'input window, operand 3, single buffered']
    #allocation11 [shape = 's32[1]{0}', space=sflag, size = 0x4, scoped, tag = 'scoped memory for tpu_custom_call.1']
    #allocation12 [shape = 'u8[131072]{0}', space=vmem, size = 0x20000, scoped, tag = 'output window, operand 0']
    %9 = vsyncpa [#allocation5], 0
    %10 = vsyncpa [#allocation8], 0
    %s11 = scalar_lea.sflag [#allocation8], 1
    %12 = vsyncpa %s11, 0
    %13 = vsyncpa [#allocation11], 0
    %14 = vsyncpa [#allocation6], 0
    %s15 = scalar_lea.sflag [#allocation6], 1
    %16 = vsyncpa %s15, 0
    loop: start=0, step=1, limit=5
    $region2: #{tpu_custom_call.1} parent=1 // loop_pre_header
      _
    $region3: #{tpu_custom_call.1} parent=1 // loop_header
      %s18 = sphi 0, %s22
      %p19 = scmp.ge.s32.totalorder %s18, 5
      %s25 = sphi 0, %s51
      %s26 = sphi 0, %s47
      %s27 = sphi 0, %s43
      %s28 = sphi 0, %s39
      %s29 = sphi 0, %s25
      %s30 = sphi 0, %s26
      %s31 = sphi 0, %s27
      %s32 = sphi 0, %s28
      %s33 = sphi 0, %s29
      %s34 = sphi 0, %s30
      %s35 = sphi 0, %s31
      %s36 = sphi 0, %s32
      %s52 = sphi 0, %s52
      %s54 = sphi 0, %s52
      %s55 = sphi 0, %s54
      %s69 = sphi 0, %s55
      %s87 = sphi 0, %s89
      %s90 = sphi 0, %s87
      %s91 = sphi 0, %s90
      %s107 = sphi 0, %s91
      %s115 = sphi 0, %s117
      %s118 = sphi 0, %s115
      %s119 = sphi 0, %s118
      %s135 = sphi 0, %s119
      %s143 = sphi 0, %s145
      %s146 = sphi 0, %s143
      %s147 = sphi 0, %s146
      %s163 = sphi 0, %s147
      %s175 = sphi 0, %s177
      %s178 = sphi 0, %s175
      %s179 = sphi 0, %s178
      %s195 = sphi 0, %s179
    $region4: #{tpu_custom_call.1} parent=1 // loop_header_branch
      %21 = sbr.rel (%p19) target = $region8
    $region5: #{tpu_custom_call.1} parent=1 // loop_body
      %s23 = ssub.s32 %s18, 1
      %s24 = ssub.s32 %s18, 2
      %s37 = sadd.s32 1, %s28
      %p38 = scmp.ge.s32.totalorder %s37, 1
      %s39 = scalar_select %p38, 0, %s37
      %s40 = sadd.s32 1, %s27
      %s41 = scalar_select %p38, %s40, %s27
      %p42 = scmp.ge.s32.totalorder %s41, 1
      %s43 = scalar_select %p42, 0, %s41
      %s44 = sadd.s32 1, %s26
      %s45 = scalar_select %p42, %s44, %s26
      %p46 = scmp.ge.s32.totalorder %s45, 3
      %s47 = scalar_select %p46, 0, %s45
      %s48 = sadd.s32 1, %s25
      %s49 = scalar_select %p46, %s48, %s25
      %p50 = scmp.ge.s32.totalorder %s49, 1
      %s51 = scalar_select %p50, 0, %s49
      %s53 = sadd.s32 %s52, 1
      %p56 = scmp.eq.s32.totalorder %s18, 2
      %p57 = scmp.ne.s32.totalorder %s52, %s54
      %p58 = scmp.eq.s32.totalorder %s18, 0
      %p59 = por %p57, %p58
      %p60 = scmp.ne.s32.totalorder %s52, %s54
      %p61 = scmp.eq.s32.totalorder %s23, 2
      %p62 = por %p60, %p61
      %p63 = scmp.ne.s32.totalorder %s54, %s55
      %p64 = scmp.eq.s32.totalorder %s23, 0
      %p65 = por %p63, %p64
      %p66 = scmp.ne.s32.totalorder %s54, %s55
      %p67 = scmp.eq.s32.totalorder %s24, 2
      %p68 = por %p66, %p67
      %p70 = scmp.ne.s32.totalorder %s55, %s69
      %p71 = scmp.eq.s32.totalorder %s24, 0
      %p72 = por %p70, %p71
      %p73 = scmp.eq.s32.totalorder %s26, 0
      %p74 = scmp.eq.s32.totalorder %s27, 0
      %p75 = pnand %p73, %p74
      %p76 = pneg %p75
      %s77 = scalar_select %p76, %s28, 0
      %p78 = scmp.eq.s32.totalorder %s47, 0
      %p79 = scmp.eq.s32.totalorder %s43, 0
      %p80 = pnand %p78, %p79
      %p81 = pneg %p80
      %s82 = scalar_select %p81, %s39, 0
      %s83 = ssub.s32 %s77, %s82
      %s84 = ssub.s32 %s25, %s51
      %s85 = sor.u32 %s83, %s84
      %p86 = scmp.eq.s32.totalorder %s85, 0
      %s88 = sadd.s32 %s87, 1
      %s89 = scalar_select %p86, %s87, %s88
      %p92 = pneg %p86
      %p93 = scmp.eq.s32.totalorder %s18, 2
      %p94 = por %p92, %p93
      %p95 = scmp.ne.s32.totalorder %s87, %s90
      %p96 = scmp.eq.s32.totalorder %s18, 0
      %p97 = por %p95, %p96
      %p98 = scmp.ne.s32.totalorder %s87, %s90
      %p99 = scmp.eq.s32.totalorder %s23, 2
      %p100 = por %p98, %p99
      %p101 = scmp.ne.s32.totalorder %s90, %s91
      %p102 = scmp.eq.s32.totalorder %s23, 0
      %p103 = por %p101, %p102
      %p104 = scmp.ne.s32.totalorder %s90, %s91
      %p105 = scmp.eq.s32.totalorder %s24, 2
      %p106 = por %p104, %p105
      %p108 = scmp.ne.s32.totalorder %s91, %s107
      %p109 = scmp.eq.s32.totalorder %s24, 0
      %p110 = por %p108, %p109
      %s111 = ssub.s32 %s27, %s43
      %s112 = ssub.s32 %s25, %s51
      %s113 = sor.u32 %s111, %s112
      %p114 = scmp.eq.s32.totalorder %s113, 0
      %s116 = sadd.s32 %s115, 1
      %s117 = scalar_select %p114, %s115, %s116
      %p120 = pneg %p114
      %p121 = scmp.eq.s32.totalorder %s18, 2
      %p122 = por %p120, %p121
      %p123 = scmp.ne.s32.totalorder %s115, %s118
      %p124 = scmp.eq.s32.totalorder %s18, 0
      %p125 = por %p123, %p124
      %p126 = scmp.ne.s32.totalorder %s115, %s118
      %p127 = scmp.eq.s32.totalorder %s23, 2
      %p128 = por %p126, %p127
      %p129 = scmp.ne.s32.totalorder %s118, %s119
      %p130 = scmp.eq.s32.totalorder %s23, 0
      %p131 = por %p129, %p130
      %p132 = scmp.ne.s32.totalorder %s118, %s119
      %p133 = scmp.eq.s32.totalorder %s24, 2
      %p134 = por %p132, %p133
      %p136 = scmp.ne.s32.totalorder %s119, %s135
      %p137 = scmp.eq.s32.totalorder %s24, 0
      %p138 = por %p136, %p137
      %s139 = ssub.s32 %s27, %s43
      %s140 = ssub.s32 %s25, %s51
      %s141 = sor.u32 %s139, %s140
      %p142 = scmp.eq.s32.totalorder %s141, 0
      %s144 = sadd.s32 %s143, 1
      %s145 = scalar_select %p142, %s143, %s144
      %p148 = pneg %p142
      %p149 = scmp.eq.s32.totalorder %s18, 2
      %p150 = por %p148, %p149
      %p151 = scmp.ne.s32.totalorder %s143, %s146
      %p152 = scmp.eq.s32.totalorder %s18, 0
      %p153 = por %p151, %p152
      %p154 = scmp.ne.s32.totalorder %s143, %s146
      %p155 = scmp.eq.s32.totalorder %s23, 2
      %p156 = por %p154, %p155
      %p157 = scmp.ne.s32.totalorder %s146, %s147
      %p158 = scmp.eq.s32.totalorder %s23, 0
      %p159 = por %p157, %p158
      %p160 = scmp.ne.s32.totalorder %s146, %s147
      %p161 = scmp.eq.s32.totalorder %s24, 2
      %p162 = por %p160, %p161
      %p164 = scmp.ne.s32.totalorder %s147, %s163
      %p165 = scmp.eq.s32.totalorder %s24, 0
      %p166 = por %p164, %p165
      %p167 = scmp.eq.s32.totalorder %s26, 2
      %s168 = scalar_select %p167, %s27, 0
      %p169 = scmp.eq.s32.totalorder %s47, 2
      %s170 = scalar_select %p169, %s43, 0
      %s171 = ssub.s32 %s168, %s170
      %s172 = ssub.s32 %s25, %s51
      %s173 = sor.u32 %s171, %s172
      %p174 = scmp.eq.s32.totalorder %s173, 0
      %s176 = sadd.s32 %s175, 1
      %s177 = scalar_select %p174, %s175, %s176
      %p180 = pneg %p174
      %p181 = scmp.eq.s32.totalorder %s18, 2
      %p182 = por %p180, %p181
      %p183 = scmp.ne.s32.totalorder %s175, %s178
      %p184 = scmp.eq.s32.totalorder %s18, 0
      %p185 = por %p183, %p184
      %p186 = scmp.ne.s32.totalorder %s175, %s178
      %p187 = scmp.eq.s32.totalorder %s23, 2
      %p188 = por %p186, %p187
      %p189 = scmp.ne.s32.totalorder %s178, %s179
      %p190 = scmp.eq.s32.totalorder %s23, 0
      %p191 = por %p189, %p190
      %p192 = scmp.ne.s32.totalorder %s178, %s179
      %p193 = scmp.eq.s32.totalorder %s24, 2
      %p194 = por %p192, %p193
      %p196 = scmp.ne.s32.totalorder %s179, %s195
      %p197 = scmp.eq.s32.totalorder %s24, 0
      %p198 = por %p196, %p197
      %p199 = scmp.le.s32.totalorder 1, %s18
      %p200 = scmp.lt.s32.totalorder %s18, 4
      %p201 = pnand %p199, %p200
      %p202 = pneg %p201
      // Predicated region
      $region9: #{tpu_custom_call.1} parent=5 // pred_check
        _
      $region10: #{tpu_custom_call.1} parent=5 // pred_check_branch
        %204 = sbr.rel (%p201) target = $region12
      $region11: #{tpu_custom_call.1} parent=5 // pred_region
        %s205 = ssub.s32 %s18, 1
        // Predicated region
        $region13: #{tpu_custom_call.1} parent=11 // pred_check
          %p206 = pneg %p65
        $region14: #{tpu_custom_call.1} parent=11 // pred_check_branch
          %208 = sbr.rel (%p206) target = $region16
        $region15: #{tpu_custom_call.1} parent=11 // pred_region
          %s210 = ssub.s32 1024, 1024
          %211 = vsyncadd [#allocation5], %s210
          %s212 = sshll.u32 [#allocation4], 4
          %s213 = int_to_ptr.vmem [resolvable:$true] %s212
          %218 = dma.hbm_to_vmem [thread:$0]  %s0, 1024, %s213, [#allocation5], 64, 64, 4
        $region16: #{tpu_custom_call.1} parent=11 // pred_fallthru
          _
        // Predicated region
        $region17: #{tpu_custom_call.1} parent=11 // pred_check
          %p219 = pneg %p131
        $region18: #{tpu_custom_call.1} parent=11 // pred_check_branch
          %221 = sbr.rel (%p219) target = $region20
        $region19: #{tpu_custom_call.1} parent=11 // pred_region
          %s222 = smul.u32 16, %s31
          %s224 = ssub.s32 2048, 2048
          %225 = vsyncadd [#allocation8], %s224
          %s226 = sadd.s32 %s29, %s222
          %s227 = smul.addr %s226, 128
          %s228 = scalar_lea.hbm %s2, %s227
          %s229 = sshll.u32 [#allocation9], 4
          %s230 = int_to_ptr.vmem [resolvable:$true] %s229
          %235 = dma.hbm_to_vmem [thread:$0]  %s228, 2048, %s230, [#allocation8], 128, 128, 8
        $region20: #{tpu_custom_call.1} parent=11 // pred_fallthru
          _
        // Predicated region
        $region21: #{tpu_custom_call.1} parent=11 // pred_check
          %p236 = pneg %p159
        $region22: #{tpu_custom_call.1} parent=11 // pred_check_branch
          %238 = sbr.rel (%p236) target = $region24
        $region23: #{tpu_custom_call.1} parent=11 // pred_region
          %s239 = smul.u32 4, %s31
          %s241 = ssub.s32 512, 512
          %242 = vsyncadd [#allocation11], %s241
          %s243 = sadd.s32 %s29, %s239
          %s244 = smul.addr %s243, 128
          %s245 = scalar_lea.hbm %s3, %s244
          %s246 = sshll.u32 [#allocation10], 4
          %s247 = int_to_ptr.vmem [resolvable:$true] %s246
          %252 = dma.hbm_to_vmem [thread:$0]  %s245, 512, %s247, [#allocation11], 128, 128, 8
        $region24: #{tpu_custom_call.1} parent=11 // pred_fallthru
          _
      $region12: #{tpu_custom_call.1} parent=5 // pred_fallthru
        _
      %p253 = scmp.lt.s32.totalorder %s18, 3
      // Predicated region
      $region25: #{tpu_custom_call.1} parent=5 // pred_check
        %p254 = pneg %p253
      $region26: #{tpu_custom_call.1} parent=5 // pred_check_branch
        %256 = sbr.rel (%p254) target = $region28
      $region27: #{tpu_custom_call.1} parent=5 // pred_region
        // Predicated region
        $region29: #{tpu_custom_call.1} parent=27 // pred_check
          %p257 = pneg %p97
        $region30: #{tpu_custom_call.1} parent=27 // pred_check_branch
          %259 = sbr.rel (%p257) target = $region32
        $region31: #{tpu_custom_call.1} parent=27 // pred_region
          %s260 = sand.u32 %s18, 1
          %s261 = scalar_lea.sflag [#allocation8], %s260
          %s262 = sand.u32 %s87, 1
          %s263 = smul.addr %s262, 64
          %s264 = scalar_lea.vmem [#allocation7], %s263
          %p265 = scmp.eq.s32.totalorder %s26, 0
          %p266 = scmp.eq.s32.totalorder %s27, 0
          %p267 = pnand %p265, %p266
          %p268 = pneg %p267
          %s269 = scalar_select %p268, %s28, 0
          %s270 = smul.u32 16, %s269
          %s272 = ssub.s32 1024, 1024
          %273 = vsyncadd %s261, %s272
          %s274 = sadd.s32 %s25, %s270
          %s275 = smul.addr %s274, 64
          %s276 = scalar_lea.hbm %s1, %s275
          %s277 = sshll.u32 %s264, 4
          %s278 = int_to_ptr.vmem [resolvable:$true] %s277
          %283 = dma.hbm_to_vmem [thread:$0]  %s276, 1024, %s278, %s261, 64, 64, 4
        $region32: #{tpu_custom_call.1} parent=27 // pred_fallthru
          _
      $region28: #{tpu_custom_call.1} parent=5 // pred_fallthru
        _
      %p284 = scmp.le.s32.totalorder 1, %s18
      %p285 = scmp.lt.s32.totalorder %s18, 4
      %p286 = pnand %p284, %p285
      %p287 = pneg %p286
      // Predicated region
      $region33: #{tpu_custom_call.1} parent=5 // pred_check
        _
      $region34: #{tpu_custom_call.1} parent=5 // pred_check_branch
        %289 = sbr.rel (%p286) target = $region36
      $region35: #{tpu_custom_call.1} parent=5 // pred_region
        %s290 = ssub.s32 %s18, 1
        // Predicated region
        $region37: #{tpu_custom_call.1} parent=35 // pred_check
          %p291 = pneg %p65
        $region38: #{tpu_custom_call.1} parent=35 // pred_check_branch
          %293 = sbr.rel (%p291) target = $region40
        $region39: #{tpu_custom_call.1} parent=35 // pred_region
          %294 = dma.done [#allocation5], 1024
        $region40: #{tpu_custom_call.1} parent=35 // pred_fallthru
          _
        %s295 = sand.u32 %s23, 1
        %s296 = scalar_lea.sflag [#allocation8], %s295
        %s297 = sand.u32 %s90, 1
        %s298 = smul.addr %s297, 64
        %s299 = scalar_lea.vmem [#allocation7], %s298
        // Predicated region
        $region41: #{tpu_custom_call.1} parent=35 // pred_check
          %p300 = pneg %p103
        $region42: #{tpu_custom_call.1} parent=35 // pred_check_branch
          %302 = sbr.rel (%p300) target = $region44
        $region43: #{tpu_custom_call.1} parent=35 // pred_region
          %303 = dma.done %s296, 1024
        $region44: #{tpu_custom_call.1} parent=35 // pred_fallthru
          _
        // Predicated region
        $region45: #{tpu_custom_call.1} parent=35 // pred_check
          %p304 = pneg %p131
        $region46: #{tpu_custom_call.1} parent=35 // pred_check_branch
          %306 = sbr.rel (%p304) target = $region48
        $region47: #{tpu_custom_call.1} parent=35 // pred_region
          %307 = dma.done [#allocation8], 2048
        $region48: #{tpu_custom_call.1} parent=35 // pred_fallthru
          _
        // Predicated region
        $region49: #{tpu_custom_call.1} parent=35 // pred_check
          %p308 = pneg %p159
        $region50: #{tpu_custom_call.1} parent=35 // pred_check_branch
          %310 = sbr.rel (%p308) target = $region52
        $region51: #{tpu_custom_call.1} parent=35 // pred_region
          %311 = dma.done [#allocation11], 512
        $region52: #{tpu_custom_call.1} parent=35 // pred_fallthru
          _
        %p312 = pneg %p65
        %p313 = pneg %p62
        %s314 = sand.u32 %s23, 1
        %s315 = scalar_lea.sflag [#allocation8], %s314
        %s316 = sand.u32 %s90, 1
        %s317 = smul.addr %s316, 64
        %s318 = scalar_lea.vmem [#allocation7], %s317
        %p319 = pneg %p103
        %p320 = pneg %p100
        %p321 = pneg %p131
        %p322 = pneg %p128
        %p323 = pneg %p159
        %p324 = pneg %p156
        %p325 = pneg %p191
        %p326 = pneg %p188
        %s327 = sand.u32 %s178, 1
        %s328 = scalar_lea.sflag [#allocation6], %s327
        %s329 = sand.u32 %s178, 1
        %s330 = smul.addr %s329, 128
        %s331 = scalar_lea.vmem [#allocation12], %s330
        %p332 = scmp.eq.s32.totalorder %s30, 0
        %p333 = scmp.eq.s32.totalorder %s31, 0
        %p334 = pnand %p332, %p333
        %p335 = pneg %p334
        %s336 = scalar_select %p335, %s32, 0
        %s337 = smul.u32 16, %s336
        %s338 = smul.u32 16, %s31
        %s339 = smul.u32 4, %s31
        %p340 = scmp.eq.s32.totalorder %s30, 2
        %s341 = scalar_select %p340, %s31, 0
        %s342 = smul.u32 16, %s341
        %s346 = smul.u32 %s31, 128
        %s347 = smul.u32 %s32, 128
        %p348 = scmp.lt.s32.totalorder %s30, 0
        %s349 = ssub.s32 0, %s30
        %s350 = scalar_select %p348, %s349, %s30
        %s351 = sand.u32 %s350, 1
        %s352 = ssub.s32 0, %s351
        %s353 = scalar_select %p348, %s352, %s351
        %s354 = ssub.s32 1, %s353
        %p355 = scmp.eq.s32.totalorder %s30, 0
        %p356 = scmp.eq.s32.totalorder %s31, 0
        %p357 = pnand %p355, %p356
        %p358 = pneg %p357
        // Predicated region
        $region53: #{tpu_custom_call.1} parent=35 // pred_check
          _
        $region54: #{tpu_custom_call.1} parent=35 // pred_check_branch
          %360 = sbr.rel (%p357) target = $region56
        $region55: #{tpu_custom_call.1} parent=35 // pred_region
          %v361 = vld [vmem:[%s299] sm:$0xf]
          %v362 = vld [vmem:[%s299 + $0x4] sm:$0xf]
          %v363 = vld [vmem:[%s299 + $0x8] sm:$0xf]
          %v364 = vld [vmem:[%s299 + $0xc] sm:$0xf]
          %v365 = vld [vmem:[%s299 + $0x10] sm:$0xf]
          %v366 = vld [vmem:[%s299 + $0x14] sm:$0xf]
          %v367 = vld [vmem:[%s299 + $0x18] sm:$0xf]
          %v368 = vld [vmem:[%s299 + $0x1c] sm:$0xf]
          %v369 = vld [vmem:[%s299 + $0x20] sm:$0xf]
          %v370 = vld [vmem:[%s299 + $0x24] sm:$0xf]
          %v371 = vld [vmem:[%s299 + $0x28] sm:$0xf]
          %v372 = vld [vmem:[%s299 + $0x2c] sm:$0xf]
          %v373 = vld [vmem:[%s299 + $0x30] sm:$0xf]
          %v374 = vld [vmem:[%s299 + $0x34] sm:$0xf]
          %v375 = vld [vmem:[%s299 + $0x38] sm:$0xf]
          %v376 = vld [vmem:[%s299 + $0x3c] sm:$0xf]
          %v393 = vunpack.c.l.b16 %v361
          %v394 = vunpack.c.l.b16 %v362
          %v395 = vunpack.c.l.b16 %v363
          %v396 = vunpack.c.l.b16 %v364
          %v397 = vunpack.c.l.b16 %v365
          %v398 = vunpack.c.l.b16 %v366
          %v399 = vunpack.c.l.b16 %v367
          %v400 = vunpack.c.l.b16 %v368
          %v401 = vunpack.c.l.b16 %v369
          %v402 = vunpack.c.l.b16 %v370
          %v403 = vunpack.c.l.b16 %v371
          %v404 = vunpack.c.l.b16 %v372
          %v405 = vunpack.c.l.b16 %v373
          %v406 = vunpack.c.l.b16 %v374
          %v407 = vunpack.c.l.b16 %v375
          %v408 = vunpack.c.l.b16 %v376
          %v409 = vpack.c.b16 %v394, %v393
          %v410 = vpack.c.b16 %v396, %v395
          %v411 = vpack.c.b16 %v398, %v397
          %v412 = vpack.c.b16 %v400, %v399
          %v413 = vpack.c.b16 %v402, %v401
          %v414 = vpack.c.b16 %v404, %v403
          %v415 = vpack.c.b16 %v406, %v405
          %v416 = vpack.c.b16 %v408, %v407
          %s425 = sshra.s32 %s347, 4
          %s426 = sand.u32 %s347, 15
          %s427 = smul.addr %s425, 8
          %s428 = scalar_lea.vmem [#allocation2], %s427
          %429 = vst [vmem:[%s428] sm:$0xff] %v409
          %430 = vst [vmem:[%s428 + $0x8] sm:$0xff] %v410
          %431 = vst [vmem:[%s428 + $0x10] sm:$0xff] %v411
          %432 = vst [vmem:[%s428 + $0x18] sm:$0xff] %v412
          %433 = vst [vmem:[%s428 + $0x20] sm:$0xff] %v413
          %434 = vst [vmem:[%s428 + $0x28] sm:$0xff] %v414
          %435 = vst [vmem:[%s428 + $0x30] sm:$0xff] %v415
          %436 = vst [vmem:[%s428 + $0x38] sm:$0xff] %v416
        $region56: #{tpu_custom_call.1} parent=35 // pred_fallthru
          _
        %s437 = sshra.s32 %s347, 7
        %s438 = sand.u32 %s347, 127
        %s439 = sshra.s32 %s346, 3
        %s440 = sand.u32 %s346, 7
        %s441 = sadd.s32 %s437, %s439
        %s442 = smul.addr %s441, 4
        %s443 = scalar_lea.vmem [#allocation4], %s442
        %v444 = vld [vmem:[%s443] sm:$0xf]
        %v445 = vld [vmem:[%s443 + $0x4] sm:$0xf]
        %v446 = vld [vmem:[%s443 + $0x8] sm:$0xf]
        %v447 = vld [vmem:[%s443 + $0xc] sm:$0xf]
        %v448 = vld [vmem:[%s443 + $0x10] sm:$0xf]
        %v449 = vld [vmem:[%s443 + $0x14] sm:$0xf]
        %v450 = vld [vmem:[%s443 + $0x18] sm:$0xf]
        %v451 = vld [vmem:[%s443 + $0x1c] sm:$0xf]
        %v452 = vld [vmem:[%s443 + $0x20] sm:$0xf]
        %v453 = vld [vmem:[%s443 + $0x24] sm:$0xf]
        %v454 = vld [vmem:[%s443 + $0x28] sm:$0xf]
        %v455 = vld [vmem:[%s443 + $0x2c] sm:$0xf]
        %v456 = vld [vmem:[%s443 + $0x30] sm:$0xf]
        %v457 = vld [vmem:[%s443 + $0x34] sm:$0xf]
        %v458 = vld [vmem:[%s443 + $0x38] sm:$0xf]
        %v459 = vld [vmem:[%s443 + $0x3c] sm:$0xf]
        %s460 = sshra.s32 %s347, 4
        %s461 = sand.u32 %s347, 15
        %s462 = smul.u32 %s353, 8
        %s463 = sadd.s32 %s460, %s462
        %s464 = smul.addr %s463, 8
        %s465 = scalar_lea.vmem [#allocation2], %s464
        %v466 = vld [vmem:[%s465] sm:$0xff]
        %v467 = vld [vmem:[%s465 + $0x8] sm:$0xff]
        %v468 = vld [vmem:[%s465 + $0x10] sm:$0xff]
        %v469 = vld [vmem:[%s465 + $0x18] sm:$0xff]
        %v470 = vld [vmem:[%s465 + $0x20] sm:$0xff]
        %v471 = vld [vmem:[%s465 + $0x28] sm:$0xff]
        %v472 = vld [vmem:[%s465 + $0x30] sm:$0xff]
        %v473 = vld [vmem:[%s465 + $0x38] sm:$0xff]
        %v490 = vunpack.c.l.b16 %v444
        %v491 = vunpack.c.l.b16 %v445
        %v492 = vunpack.c.l.b16 %v446
        %v493 = vunpack.c.l.b16 %v447
        %v494 = vunpack.c.l.b16 %v448
        %v495 = vunpack.c.l.b16 %v449
        %v496 = vunpack.c.l.b16 %v450
        %v497 = vunpack.c.l.b16 %v451
        %v498 = vunpack.c.l.b16 %v452
        %v499 = vunpack.c.l.b16 %v453
        %v500 = vunpack.c.l.b16 %v454
        %v501 = vunpack.c.l.b16 %v455
        %v502 = vunpack.c.l.b16 %v456
        %v503 = vunpack.c.l.b16 %v457
        %v504 = vunpack.c.l.b16 %v458
        %v505 = vunpack.c.l.b16 %v459
        %v506 = vpack.c.b16 %v491, %v490
        %v507 = vpack.c.b16 %v493, %v492
        %v508 = vpack.c.b16 %v495, %v494
        %v509 = vpack.c.b16 %v497, %v496
        %v510 = vpack.c.b16 %v499, %v498
        %v511 = vpack.c.b16 %v501, %v500
        %v512 = vpack.c.b16 %v503, %v502
        %v513 = vpack.c.b16 %v505, %v504
        %522 = vmatprep.subr.bf16.mxu0 0
        %523 = vmatpush1.bf16.msra.mxu0 %v466
        %524 = vmatprep.subr.bf16.mxu0 0
        %525 = vmatpush1.bf16.msra.mxu0 %v467
        %526 = vmatprep.subr.bf16.mxu0 0
        %527 = vmatpush1.bf16.msra.mxu0 %v468
        %528 = vmatprep.subr.bf16.mxu0 0
        %529 = vmatpush1.bf16.msra.mxu0 %v469
        %530 = vmatprep.subr.bf16.mxu0 0
        %531 = vmatpush1.bf16.msra.mxu0 %v470
        %532 = vmatprep.subr.bf16.mxu0 0
        %533 = vmatpush1.bf16.msra.mxu0 %v471
        %534 = vmatprep.subr.bf16.mxu0 0
        %535 = vmatpush1.bf16.msra.mxu0 %v472
        %536 = vmatprep.subr.bf16.mxu0 0
        %537 = vmatpush1.bf16.msra.mxu0 %v473
        %538 = vmatprep.subr.bf16.mxu0 0
        %539 = vmatpush1.bf16.msra.mxu0 0
        %540 = vmatprep.subr.bf16.mxu0 0
        %541 = vmatpush1.bf16.msra.mxu0 0
        %542 = vmatprep.subr.bf16.mxu0 0
        %543 = vmatpush1.bf16.msra.mxu0 0
        %544 = vmatprep.subr.bf16.mxu0 0
        %545 = vmatpush1.bf16.msra.mxu0 0
        %546 = vmatprep.subr.bf16.mxu0 0
        %547 = vmatpush1.bf16.msra.mxu0 0
        %548 = vmatprep.subr.bf16.mxu0 0
        %549 = vmatpush1.bf16.msra.mxu0 0
        %550 = vmatprep.subr.bf16.mxu0 0
        %551 = vmatpush1.bf16.msra.mxu0 0
        %552 = vmatprep.subr.bf16.mxu0 0
        %553 = vmatpush1.bf16.msra.mxu0 0
        %554 = vmatprep.mubr.bf16.mxu0 0
        %555 = vmatmul.mubr.bf16.gmra.mrb[0].mxu0 %v506
        %v556 = vpop.f32.mrb[0].mxu0
        %v557 = vadd.f32 0.0, %v556
        %v558 = vpop.f32.mrb[0].mxu0
        %v559 = vpop.f32.mrb[0].mxu0
        %v560 = vadd.f32 0.0, %v559
        %v561 = vpop.f32.mrb[0].mxu0
        %562 = vmatprep.mubr.bf16.mxu0 0
        %563 = vmatmul.mubr.bf16.gmra.mrb[0].mxu0 %v507
        %v564 = vpop.f32.mrb[0].mxu0
        %v565 = vadd.f32 0.0, %v564
        %v566 = vpop.f32.mrb[0].mxu0
        %v567 = vpop.f32.mrb[0].mxu0
        %v568 = vadd.f32 0.0, %v567
        %v569 = vpop.f32.mrb[0].mxu0
        %570 = vmatprep.mubr.bf16.mxu0 0
        %571 = vmatmul.mubr.bf16.gmra.mrb[0].mxu0 %v508
        %v572 = vpop.f32.mrb[0].mxu0
        %v573 = vadd.f32 0.0, %v572
        %v574 = vpop.f32.mrb[0].mxu0
        %v575 = vpop.f32.mrb[0].mxu0
        %v576 = vadd.f32 0.0, %v575
        %v577 = vpop.f32.mrb[0].mxu0
        %578 = vmatprep.mubr.bf16.mxu0 0
        %579 = vmatmul.mubr.bf16.gmra.mrb[0].mxu0 %v509
        %v580 = vpop.f32.mrb[0].mxu0
        %v581 = vadd.f32 0.0, %v580
        %v582 = vpop.f32.mrb[0].mxu0
        %v583 = vpop.f32.mrb[0].mxu0
        %v584 = vadd.f32 0.0, %v583
        %v585 = vpop.f32.mrb[0].mxu0
        %586 = vmatprep.mubr.bf16.mxu0 0
        %587 = vmatmul.mubr.bf16.gmra.mrb[0].mxu0 %v510
        %v588 = vpop.f32.mrb[0].mxu0
        %v589 = vadd.f32 0.0, %v588
        %v590 = vpop.f32.mrb[0].mxu0
        %v591 = vpop.f32.mrb[0].mxu0
        %v592 = vadd.f32 0.0, %v591
        %v593 = vpop.f32.mrb[0].mxu0
        %594 = vmatprep.mubr.bf16.mxu0 0
        %595 = vmatmul.mubr.bf16.gmra.mrb[0].mxu0 %v511
        %v596 = vpop.f32.mrb[0].mxu0
        %v597 = vadd.f32 0.0, %v596
        %v598 = vpop.f32.mrb[0].mxu0
        %v599 = vpop.f32.mrb[0].mxu0
        %v600 = vadd.f32 0.0, %v599
        %v601 = vpop.f32.mrb[0].mxu0
        %602 = vmatprep.mubr.bf16.mxu0 0
        %603 = vmatmul.mubr.bf16.gmra.mrb[0].mxu0 %v512
        %v604 = vpop.f32.mrb[0].mxu0
        %v605 = vadd.f32 0.0, %v604
        %v606 = vpop.f32.mrb[0].mxu0
        %v607 = vpop.f32.mrb[0].mxu0
        %v608 = vadd.f32 0.0, %v607
        %v609 = vpop.f32.mrb[0].mxu0
        %610 = vmatprep.mubr.bf16.mxu0 0
        %611 = vmatmul.mubr.bf16.gmra.mrb[0].mxu0 %v513
        %v612 = vpop.f32.mrb[0].mxu0
        %v613 = vadd.f32 0.0, %v612
        %v614 = vpop.f32.mrb[0].mxu0
        %v615 = vpop.f32.mrb[0].mxu0
        %v616 = vadd.f32 0.0, %v615
        %v617 = vpop.f32.mrb[0].mxu0
        %618 = vdwg.mxu0
        %p619 = scmp.eq.s32.totalorder %s32, 0
        // Predicated region
        $region57: #{tpu_custom_call.1} parent=35 // pred_check
          %p620 = pneg %p619
        $region58: #{tpu_custom_call.1} parent=35 // pred_check_branch
          %622 = sbr.rel (%p620) target = $region60
        $region59: #{tpu_custom_call.1} parent=35 // pred_region
          %623 = vst [vmem:[#allocation3] sm:$0xff] %v557
          %624 = vst [vmem:[#allocation3 + $0x8] sm:$0xff] %v560
          %625 = vst [vmem:[#allocation3 + $0x10] sm:$0xff] %v565
          %626 = vst [vmem:[#allocation3 + $0x18] sm:$0xff] %v568
          %627 = vst [vmem:[#allocation3 + $0x20] sm:$0xff] %v573
          %628 = vst [vmem:[#allocation3 + $0x28] sm:$0xff] %v576
          %629 = vst [vmem:[#allocation3 + $0x30] sm:$0xff] %v581
          %630 = vst [vmem:[#allocation3 + $0x38] sm:$0xff] %v584
          %631 = vst [vmem:[#allocation3 + $0x40] sm:$0xff] %v589
          %632 = vst [vmem:[#allocation3 + $0x48] sm:$0xff] %v592
          %633 = vst [vmem:[#allocation3 + $0x50] sm:$0xff] %v597
          %634 = vst [vmem:[#allocation3 + $0x58] sm:$0xff] %v600
          %635 = vst [vmem:[#allocation3 + $0x60] sm:$0xff] %v605
          %636 = vst [vmem:[#allocation3 + $0x68] sm:$0xff] %v608
          %637 = vst [vmem:[#allocation3 + $0x70] sm:$0xff] %v613
          %638 = vst [vmem:[#allocation3 + $0x78] sm:$0xff] %v616
        $region60: #{tpu_custom_call.1} parent=35 // pred_fallthru
          _
        %p639 = scmp.gt.s32.totalorder %s32, 0
        // Predicated region
        $region61: #{tpu_custom_call.1} parent=35 // pred_check
          %p640 = pneg %p639
        $region62: #{tpu_custom_call.1} parent=35 // pred_check_branch
          %642 = sbr.rel (%p640) target = $region64
        $region63: #{tpu_custom_call.1} parent=35 // pred_region
          %v643 = vld [vmem:[#allocation3] sm:$0xff]
          %v644 = vld [vmem:[#allocation3 + $0x8] sm:$0xff]
          %v645 = vld [vmem:[#allocation3 + $0x10] sm:$0xff]
          %v646 = vld [vmem:[#allocation3 + $0x18] sm:$0xff]
          %v647 = vld [vmem:[#allocation3 + $0x20] sm:$0xff]
          %v648 = vld [vmem:[#allocation3 + $0x28] sm:$0xff]
          %v649 = vld [vmem:[#allocation3 + $0x30] sm:$0xff]
          %v650 = vld [vmem:[#allocation3 + $0x38] sm:$0xff]
          %v651 = vld [vmem:[#allocation3 + $0x40] sm:$0xff]
          %v652 = vld [vmem:[#allocation3 + $0x48] sm:$0xff]
          %v653 = vld [vmem:[#allocation3 + $0x50] sm:$0xff]
          %v654 = vld [vmem:[#allocation3 + $0x58] sm:$0xff]
          %v655 = vld [vmem:[#allocation3 + $0x60] sm:$0xff]
          %v656 = vld [vmem:[#allocation3 + $0x68] sm:$0xff]
          %v657 = vld [vmem:[#allocation3 + $0x70] sm:$0xff]
          %v658 = vld [vmem:[#allocation3 + $0x78] sm:$0xff]
          %v659 = vadd.f32 %v643, %v557
          %v660 = vadd.f32 %v644, %v560
          %v661 = vadd.f32 %v645, %v565
          %v662 = vadd.f32 %v646, %v568
          %v663 = vadd.f32 %v647, %v573
          %v664 = vadd.f32 %v648, %v576
          %v665 = vadd.f32 %v649, %v581
          %v666 = vadd.f32 %v650, %v584
          %v667 = vadd.f32 %v651, %v589
          %v668 = vadd.f32 %v652, %v592
          %v669 = vadd.f32 %v653, %v597
          %v670 = vadd.f32 %v654, %v600
          %v671 = vadd.f32 %v655, %v605
          %v672 = vadd.f32 %v656, %v608
          %v673 = vadd.f32 %v657, %v613
          %v674 = vadd.f32 %v658, %v616
          %675 = vst [vmem:[#allocation3] sm:$0xff] %v659
          %676 = vst [vmem:[#allocation3 + $0x8] sm:$0xff] %v660
          %677 = vst [vmem:[#allocation3 + $0x10] sm:$0xff] %v661
          %678 = vst [vmem:[#allocation3 + $0x18] sm:$0xff] %v662
          %679 = vst [vmem:[#allocation3 + $0x20] sm:$0xff] %v663
          %680 = vst [vmem:[#allocation3 + $0x28] sm:$0xff] %v664
          %681 = vst [vmem:[#allocation3 + $0x30] sm:$0xff] %v665
          %682 = vst [vmem:[#allocation3 + $0x38] sm:$0xff] %v666
          %683 = vst [vmem:[#allocation3 + $0x40] sm:$0xff] %v667
          %684 = vst [vmem:[#allocation3 + $0x48] sm:$0xff] %v668
          %685 = vst [vmem:[#allocation3 + $0x50] sm:$0xff] %v669
          %686 = vst [vmem:[#allocation3 + $0x58] sm:$0xff] %v670
          %687 = vst [vmem:[#allocation3 + $0x60] sm:$0xff] %v671
          %688 = vst [vmem:[#allocation3 + $0x68] sm:$0xff] %v672
          %689 = vst [vmem:[#allocation3 + $0x70] sm:$0xff] %v673
          %690 = vst [vmem:[#allocation3 + $0x78] sm:$0xff] %v674
        $region64: #{tpu_custom_call.1} parent=35 // pred_fallthru
          _
        // Predicated region
        $region65: #{tpu_custom_call.1} parent=35 // pred_check
          %p691 = pneg %p619
        $region66: #{tpu_custom_call.1} parent=35 // pred_check_branch
          %693 = sbr.rel (%p691) target = $region68
        $region67: #{tpu_custom_call.1} parent=35 // pred_region
          %v694 = vld [vmem:[#allocation3] sm:$0xff]
          %v695 = vld [vmem:[#allocation3 + $0x8] sm:$0xff]
          %v696 = vld [vmem:[#allocation3 + $0x10] sm:$0xff]
          %v697 = vld [vmem:[#allocation3 + $0x18] sm:$0xff]
          %v698 = vld [vmem:[#allocation3 + $0x20] sm:$0xff]
          %v699 = vld [vmem:[#allocation3 + $0x28] sm:$0xff]
          %v700 = vld [vmem:[#allocation3 + $0x30] sm:$0xff]
          %v701 = vld [vmem:[#allocation3 + $0x38] sm:$0xff]
          %v702 = vld [vmem:[#allocation3 + $0x40] sm:$0xff]
          %v703 = vld [vmem:[#allocation3 + $0x48] sm:$0xff]
          %v704 = vld [vmem:[#allocation3 + $0x50] sm:$0xff]
          %v705 = vld [vmem:[#allocation3 + $0x58] sm:$0xff]
          %v706 = vld [vmem:[#allocation3 + $0x60] sm:$0xff]
          %v707 = vld [vmem:[#allocation3 + $0x68] sm:$0xff]
          %v708 = vld [vmem:[#allocation3 + $0x70] sm:$0xff]
          %v709 = vld [vmem:[#allocation3 + $0x78] sm:$0xff]
          %v710 = vld [vmem:[#allocation10] sm:$0xff]
          %v711 = vld [vmem:[#allocation10 + $0x8] sm:$0xff]
          %v712 = vld [vmem:[#allocation10 + $0x10] sm:$0xff]
          %v713 = vld [vmem:[#allocation10 + $0x18] sm:$0xff]
          %vm714 = vnez %v710
          %vm715 = vnez %v711
          %vm716 = vnez %v712
          %vm717 = vnez %v713
          %v718 = vld [vmem:[#allocation9] sm:$0xff]
          %v719 = vld [vmem:[#allocation9 + $0x8] sm:$0xff]
          %v720 = vld [vmem:[#allocation9 + $0x10] sm:$0xff]
          %v721 = vld [vmem:[#allocation9 + $0x18] sm:$0xff]
          %v722 = vld [vmem:[#allocation9 + $0x20] sm:$0xff]
          %v723 = vld [vmem:[#allocation9 + $0x28] sm:$0xff]
          %v724 = vld [vmem:[#allocation9 + $0x30] sm:$0xff]
          %v725 = vld [vmem:[#allocation9 + $0x38] sm:$0xff]
          %v726 = vld [vmem:[#allocation9 + $0x40] sm:$0xff]
          %v727 = vld [vmem:[#allocation9 + $0x48] sm:$0xff]
          %v728 = vld [vmem:[#allocation9 + $0x50] sm:$0xff]
          %v729 = vld [vmem:[#allocation9 + $0x58] sm:$0xff]
          %v730 = vld [vmem:[#allocation9 + $0x60] sm:$0xff]
          %v731 = vld [vmem:[#allocation9 + $0x68] sm:$0xff]
          %v732 = vld [vmem:[#allocation9 + $0x70] sm:$0xff]
          %v733 = vld [vmem:[#allocation9 + $0x78] sm:$0xff]
          %v734 = vsel %vm714, 16843009, 0
          %v735 = vsel %vm715, 16843009, 0
          %v736 = vsel %vm716, 16843009, 0
          %v737 = vsel %vm717, 16843009, 0
          %v738 = vunpack.c.0.s8 %v734
          %v739 = vunpack.c.1.s8 %v734
          %v740 = vunpack.c.2.s8 %v734
          %v741 = vunpack.c.3.s8 %v734
          %v742 = vunpack.c.0.s8 %v735
          %v743 = vunpack.c.1.s8 %v735
          %v744 = vunpack.c.2.s8 %v735
          %v745 = vunpack.c.3.s8 %v735
          %v746 = vunpack.c.0.s8 %v736
          %v747 = vunpack.c.1.s8 %v736
          %v748 = vunpack.c.2.s8 %v736
          %v749 = vunpack.c.3.s8 %v736
          %v750 = vunpack.c.0.s8 %v737
          %v751 = vunpack.c.1.s8 %v737
          %v752 = vunpack.c.2.s8 %v737
          %v753 = vunpack.c.3.s8 %v737
          %v754 = vpack.c.b16 %v738, %v738
          %v755 = vpack.c.b8 %v754, %v754
          %v756 = vpack.c.b16 %v739, %v739
          %v757 = vpack.c.b8 %v756, %v756
          %v758 = vpack.c.b16 %v740, %v740
          %v759 = vpack.c.b8 %v758, %v758
          %v760 = vpack.c.b16 %v741, %v741
          %v761 = vpack.c.b8 %v760, %v760
          %v762 = vpack.c.b16 %v742, %v742
          %v763 = vpack.c.b8 %v762, %v762
          %v764 = vpack.c.b16 %v743, %v743
          %v765 = vpack.c.b8 %v764, %v764
          %v766 = vpack.c.b16 %v744, %v744
          %v767 = vpack.c.b8 %v766, %v766
          %v768 = vpack.c.b16 %v745, %v745
          %v769 = vpack.c.b8 %v768, %v768
          %v770 = vpack.c.b16 %v746, %v746
          %v771 = vpack.c.b8 %v770, %v770
          %v772 = vpack.c.b16 %v747, %v747
          %v773 = vpack.c.b8 %v772, %v772
          %v774 = vpack.c.b16 %v748, %v748
          %v775 = vpack.c.b8 %v774, %v774
          %v776 = vpack.c.b16 %v749, %v749
          %v777 = vpack.c.b8 %v776, %v776
          %v778 = vpack.c.b16 %v750, %v750
          %v779 = vpack.c.b8 %v778, %v778
          %v780 = vpack.c.b16 %v751, %v751
          %v781 = vpack.c.b8 %v780, %v780
          %v782 = vpack.c.b16 %v752, %v752
          %v783 = vpack.c.b8 %v782, %v782
          %v784 = vpack.c.b16 %v753, %v753
          %v785 = vpack.c.b8 %v784, %v784
          %vm786 = vnez %v755
          %vm787 = vnez %v757
          %vm788 = vnez %v759
          %vm789 = vnez %v761
          %vm790 = vnez %v763
          %vm791 = vnez %v765
          %vm792 = vnez %v767
          %vm793 = vnez %v769
          %vm794 = vnez %v771
          %vm795 = vnez %v773
          %vm796 = vnez %v775
          %vm797 = vnez %v777
          %vm798 = vnez %v779
          %vm799 = vnez %v781
          %vm800 = vnez %v783
          %vm801 = vnez %v785
          %v802 = vsel %vm786, 16843009, 0
          %v803 = vsel %vm787, 16843009, 0
          %v804 = vsel %vm788, 16843009, 0
          %v805 = vsel %vm789, 16843009, 0
          %v806 = vsel %vm790, 16843009, 0
          %v807 = vsel %vm791, 16843009, 0
          %v808 = vsel %vm792, 16843009, 0
          %v809 = vsel %vm793, 16843009, 0
          %v810 = vsel %vm794, 16843009, 0
          %v811 = vsel %vm795, 16843009, 0
          %v812 = vsel %vm796, 16843009, 0
          %v813 = vsel %vm797, 16843009, 0
          %v814 = vsel %vm798, 16843009, 0
          %v815 = vsel %vm799, 16843009, 0
          %v816 = vsel %vm800, 16843009, 0
          %v817 = vsel %vm801, 16843009, 0
          %v818 = vunpack.c.0.s8 %v802
          %v819 = vunpack.c.0.s8 %v803
          %v820 = vunpack.c.0.s8 %v804
          %v821 = vunpack.c.0.s8 %v805
          %v822 = vunpack.c.0.s8 %v806
          %v823 = vunpack.c.0.s8 %v807
          %v824 = vunpack.c.0.s8 %v808
          %v825 = vunpack.c.0.s8 %v809
          %v826 = vunpack.c.0.s8 %v810
          %v827 = vunpack.c.0.s8 %v811
          %v828 = vunpack.c.0.s8 %v812
          %v829 = vunpack.c.0.s8 %v813
          %v830 = vunpack.c.0.s8 %v814
          %v831 = vunpack.c.0.s8 %v815
          %v832 = vunpack.c.0.s8 %v816
          %v833 = vunpack.c.0.s8 %v817
          %vm834 = vcmp.ne.s32.totalorder %v818, 0
          %vm835 = vcmp.ne.s32.totalorder %v819, 0
          %vm836 = vcmp.ne.s32.totalorder %v820, 0
          %vm837 = vcmp.ne.s32.totalorder %v821, 0
          %vm838 = vcmp.ne.s32.totalorder %v822, 0
          %vm839 = vcmp.ne.s32.totalorder %v823, 0
          %vm840 = vcmp.ne.s32.totalorder %v824, 0
          %vm841 = vcmp.ne.s32.totalorder %v825, 0
          %vm842 = vcmp.ne.s32.totalorder %v826, 0
          %vm843 = vcmp.ne.s32.totalorder %v827, 0
          %vm844 = vcmp.ne.s32.totalorder %v828, 0
          %vm845 = vcmp.ne.s32.totalorder %v829, 0
          %vm846 = vcmp.ne.s32.totalorder %v830, 0
          %vm847 = vcmp.ne.s32.totalorder %v831, 0
          %vm848 = vcmp.ne.s32.totalorder %v832, 0
          %vm849 = vcmp.ne.s32.totalorder %v833, 0
          %v850 = vsel %vm834, %v718, %v694
          %v851 = vsel %vm835, %v719, %v695
          %v852 = vsel %vm836, %v720, %v696
          %v853 = vsel %vm837, %v721, %v697
          %v854 = vsel %vm838, %v722, %v698
          %v855 = vsel %vm839, %v723, %v699
          %v856 = vsel %vm840, %v724, %v700
          %v857 = vsel %vm841, %v725, %v701
          %v858 = vsel %vm842, %v726, %v702
          %v859 = vsel %vm843, %v727, %v703
          %v860 = vsel %vm844, %v728, %v704
          %v861 = vsel %vm845, %v729, %v705
          %v862 = vsel %vm846, %v730, %v706
          %v863 = vsel %vm847, %v731, %v707
          %v864 = vsel %vm848, %v732, %v708
          %v865 = vsel %vm849, %v733, %v709
          %v866 = vpack.c.bf16 %v851, %v850
          %v867 = vpack.c.bf16 %v853, %v852
          %v868 = vpack.c.bf16 %v855, %v854
          %v869 = vpack.c.bf16 %v857, %v856
          %v870 = vpack.c.bf16 %v859, %v858
          %v871 = vpack.c.bf16 %v861, %v860
          %v872 = vpack.c.bf16 %v863, %v862
          %v873 = vpack.c.bf16 %v865, %v864
          %s874 = sshra.s32 %s346, 4
          %s875 = sand.u32 %s346, 15
          %s876 = smul.u32 %s354, 8
          %s877 = sadd.s32 %s874, %s876
          %s878 = smul.addr %s877, 8
          %s879 = scalar_lea.vmem [#allocation2], %s878
          %880 = vst [vmem:[%s879] sm:$0xff] %v866
          %881 = vst [vmem:[%s879 + $0x8] sm:$0xff] %v867
          %882 = vst [vmem:[%s879 + $0x10] sm:$0xff] %v868
          %883 = vst [vmem:[%s879 + $0x18] sm:$0xff] %v869
          %884 = vst [vmem:[%s879 + $0x20] sm:$0xff] %v870
          %885 = vst [vmem:[%s879 + $0x28] sm:$0xff] %v871
          %886 = vst [vmem:[%s879 + $0x30] sm:$0xff] %v872
          %887 = vst [vmem:[%s879 + $0x38] sm:$0xff] %v873
          %p888 = scmp.eq.s32.totalorder %s30, 2
          // Predicated region
          $region69: #{tpu_custom_call.1} parent=67 // pred_check
            %p889 = pneg %p888
          $region70: #{tpu_custom_call.1} parent=67 // pred_check_branch
            %891 = sbr.rel (%p889) target = $region72
          $region71: #{tpu_custom_call.1} parent=67 // pred_region
            %892 = vst [vmem:[%s331] sm:$0xff] %v850
            %893 = vst [vmem:[%s331 + $0x8] sm:$0xff] %v851
            %894 = vst [vmem:[%s331 + $0x10] sm:$0xff] %v852
            %895 = vst [vmem:[%s331 + $0x18] sm:$0xff] %v853
            %896 = vst [vmem:[%s331 + $0x20] sm:$0xff] %v854
            %897 = vst [vmem:[%s331 + $0x28] sm:$0xff] %v855
            %898 = vst [vmem:[%s331 + $0x30] sm:$0xff] %v856
            %899 = vst [vmem:[%s331 + $0x38] sm:$0xff] %v857
            %900 = vst [vmem:[%s331 + $0x40] sm:$0xff] %v858
            %901 = vst [vmem:[%s331 + $0x48] sm:$0xff] %v859
            %902 = vst [vmem:[%s331 + $0x50] sm:$0xff] %v860
            %903 = vst [vmem:[%s331 + $0x58] sm:$0xff] %v861
            %904 = vst [vmem:[%s331 + $0x60] sm:$0xff] %v862
            %905 = vst [vmem:[%s331 + $0x68] sm:$0xff] %v863
            %906 = vst [vmem:[%s331 + $0x70] sm:$0xff] %v864
            %907 = vst [vmem:[%s331 + $0x78] sm:$0xff] %v865
          $region72: #{tpu_custom_call.1} parent=67 // pred_fallthru
            _
        $region68: #{tpu_custom_call.1} parent=35 // pred_fallthru
          _
        %s908 = sand.u32 %s178, 1
        %s909 = scalar_lea.sflag [#allocation6], %s908
        %s910 = sand.u32 %s178, 1
        %s911 = smul.addr %s910, 128
        %s912 = scalar_lea.vmem [#allocation12], %s911
        // Predicated region
        $region73: #{tpu_custom_call.1} parent=35 // pred_check
          %p913 = pneg %p188
        $region74: #{tpu_custom_call.1} parent=35 // pred_check_branch
          %915 = sbr.rel (%p913) target = $region76
        $region75: #{tpu_custom_call.1} parent=35 // pred_region
          %p916 = scmp.eq.s32.totalorder %s30, 2
          %s917 = scalar_select %p916, %s31, 0
          %s918 = smul.u32 16, %s917
          %s920 = ssub.s32 2048, 2048
          %921 = vsyncadd %s909, %s920
          %s922 = sadd.s32 %s29, %s918
          %s923 = smul.addr %s922, 128
          %s924 = scalar_lea.hbm %s4, %s923
          %s925 = sshll.u32 %s912, 4
          %s926 = int_to_ptr.vmem [resolvable:$true] %s925
          %931 = dma.vmem_to_hbm [thread:$0]  %s926, 2048, %s924, %s909, 128, 128, 8
        $region76: #{tpu_custom_call.1} parent=35 // pred_fallthru
          _
      $region36: #{tpu_custom_call.1} parent=5 // pred_fallthru
        _
      %p932 = scmp.le.s32.totalorder 2, %s18
      // Predicated region
      $region77: #{tpu_custom_call.1} parent=5 // pred_check
        %p933 = pneg %p932
      $region78: #{tpu_custom_call.1} parent=5 // pred_check_branch
        %935 = sbr.rel (%p933) target = $region80
      $region79: #{tpu_custom_call.1} parent=5 // pred_region
        %s936 = ssub.s32 %s18, 2
        // Predicated region
        $region81: #{tpu_custom_call.1} parent=79 // pred_check
          %p937 = pneg %p194
        $region82: #{tpu_custom_call.1} parent=79 // pred_check_branch
          %939 = sbr.rel (%p937) target = $region84
        $region83: #{tpu_custom_call.1} parent=79 // pred_region
          %s940 = sand.u32 %s179, 1
          %s941 = scalar_lea.sflag [#allocation6], %s940
          %s942 = sand.u32 %s179, 1
          %s943 = smul.addr %s942, 128
          %s944 = scalar_lea.vmem [#allocation12], %s943
          %945 = dma.done %s941, 2048
        $region84: #{tpu_custom_call.1} parent=79 // pred_fallthru
          _
      $region80: #{tpu_custom_call.1} parent=5 // pred_fallthru
        _
    $region6: #{tpu_custom_call.1} parent=1 // loop_footer
      %s22 = sadd.s32 1, %s18
    $region7: #{tpu_custom_call.1} parent=1 // loop_footer_branch
      %17 = sbr.rel target = $region3
    $region8: #{tpu_custom_call.1} parent=1 // loop_exit
      _
    %946 = vsyncpa [#allocation5], 1
    %s947 = scalar_lea.sflag [#allocation5], 1
    %948 = vsyncpa %s947, 1
    %949 = vsyncpa [#allocation8], 1
    %s950 = scalar_lea.sflag [#allocation8], 1
    %951 = vsyncpa %s950, 1
    %952 = vsyncpa [#allocation11], 1
    %953 = vsyncpa [#allocation6], 1
    %s954 = scalar_lea.sflag [#allocation6], 1
    %955 = vsyncpa %s954, 1

</llo_original>
